<compile_context>
chip_gen: v7x
topology: tpu7x:2x2x1
jax: 0.10.0
libtpu: 0.0.40
codegen_flags: <defaults>
</compile_context>

<pallas_src>
import functools
import math

import jax
import jax.numpy as jnp
from jax.experimental import pallas as pl
from jax.experimental.pallas import tpu as pltpu

N_HEADS = 3
H_DIM = 256  # per-head dimension (the module's h_dim attribute)


def _flash_attn_kernel(q_ref, k_ref, v_ref, o_ref, m_sc, l_sc, acc_sc, *, scale):
    """One (batch*head, q-tile, k-tile) step of online-softmax attention.

    q_ref: (tq, D) bf16; k_ref/v_ref: (tk, D) bf16; o_ref: (tq, D) f32.
    Scratch: m_sc/l_sc (tq, 1) f32, acc_sc (tq, D) f32.
    """
    ki = pl.program_id(2)

    @pl.when(ki == 0)
    def _():
        m_sc[...] = jnp.full_like(m_sc, -jnp.inf)
        l_sc[...] = jnp.zeros_like(l_sc)
        acc_sc[...] = jnp.zeros_like(acc_sc)

    # Fold the attention scale into Q (pre-MXU; 1/16 is exact in bf16).
    q = q_ref[...] * scale          # (tq, D) bf16
    k = k_ref[...]                  # (tk, D) bf16
    v = v_ref[...]                  # (tk, D) bf16

    # Scores: contract the last (D) dims directly — no K transpose through
    # the XLU.  bf16 operands, f32 accumulation on the MXU.
    s = jax.lax.dot_general(
        q, k, (((1,), (1,)), ((), ())), preferred_element_type=jnp.float32
    )  # (tq, tk) f32

    # Online softmax update (all statistics in f32).
    m_prev = m_sc[...]
    m_new = jnp.maximum(m_prev, jnp.max(s, axis=-1, keepdims=True))
    alpha = jnp.exp(m_prev - m_new)
    p = jnp.exp(s - m_new)          # (tq, tk) f32
    l_sc[...] = alpha * l_sc[...] + jnp.sum(p, axis=-1, keepdims=True)
    acc_sc[...] = alpha * acc_sc[...] + jnp.dot(
        p.astype(v.dtype), v, preferred_element_type=jnp.float32
    )
    m_sc[...] = m_new

    @pl.when(ki == pl.num_programs(2) - 1)
    def _():
        inv_l = pl.reciprocal(l_sc[...], approx=True)   # EUP slot
        o_ref[...] = (acc_sc[...] * inv_l).astype(o_ref.dtype)


def mha_attention(q, k, v, *, q_tile=128, k_tile=128):
    """Multi-head scaled-dot-product attention.

    q, k, v: [B, H, S, D] float32.  Returns [B, H, S, D] float32.
    """
    B, H, S, D = q.shape
    assert H == N_HEADS and D == H_DIM
    assert D % 128 == 0, "head dim must be lane-aligned"

    tq = min(q_tile, S)
    tk = min(k_tile, S)
    assert S % tq == 0 and S % tk == 0
    assert tq % 8 == 0 and tk % 8 == 0, "tiles must respect (8, 128) tiling"

    BH = B * H
    # Layout plumbing only: collapse (B, H) into one leading axis and feed the
    # MXU bf16 operands (halves DMA bytes; MXU-native on all generations).
    q3 = q.reshape(BH, S, D).astype(jnp.bfloat16)
    k3 = k.reshape(BH, S, D).astype(jnp.bfloat16)
    v3 = v.reshape(BH, S, D).astype(jnp.bfloat16)

    kernel = functools.partial(_flash_attn_kernel, scale=1.0 / math.sqrt(D))

    grid = (BH, S // tq, S // tk)
    out = pl.pallas_call(
        kernel,
        out_shape=jax.ShapeDtypeStruct((BH, S, D), q.dtype),
        grid_spec=pltpu.PrefetchScalarGridSpec(
            num_scalar_prefetch=0,
            grid=grid,
            in_specs=[
                pl.BlockSpec((pl.Squeezed(), tq, D), lambda bh, qi, ki: (bh, qi, 0)),
                pl.BlockSpec((pl.Squeezed(), tk, D), lambda bh, qi, ki: (bh, ki, 0)),
                pl.BlockSpec((pl.Squeezed(), tk, D), lambda bh, qi, ki: (bh, ki, 0)),
            ],
            out_specs=pl.BlockSpec(
                (pl.Squeezed(), tq, D), lambda bh, qi, ki: (bh, qi, 0)
            ),
            scratch_shapes=[
                pltpu.VMEM((tq, 1), jnp.float32),   # running max
                pltpu.VMEM((tq, 1), jnp.float32),   # running denom
                pltpu.VMEM((tq, D), jnp.float32),   # output accumulator
            ],
        ),
        compiler_params=pltpu.CompilerParams(
            dimension_semantics=("parallel", "parallel", "arbitrary"),
        ),
    )(q3, k3, v3)

    return out.reshape(B, H, S, D)


def _reference_attention(q, k, v):
    scale = 1.0 / math.sqrt(H_DIM)
    s = jnp.einsum("bhqd,bhkd->bhqk", q, k) * scale
    p = jax.nn.softmax(s, axis=-1)
    return jnp.einsum("bhqk,bhkd->bhqd", p, v)


if __name__ == "__main__":
    # small, deterministic inputs consistent with the module's attributes
    B, S = 2, 16
    key = jax.random.PRNGKey(0)
    kq, kk, kv = jax.random.split(key, 3)
    q = jax.random.normal(kq, (B, N_HEADS, S, H_DIM), dtype=jnp.float32)
    k = jax.random.normal(kk, (B, N_HEADS, S, H_DIM), dtype=jnp.float32)
    v = jax.random.normal(kv, (B, N_HEADS, S, H_DIM), dtype=jnp.float32)

    # tiny tiles so the test exercises the multi-step online-softmax path
    out = jax.block_until_ready(mha_attention(q, k, v, q_tile=8, k_tile=8))

    ref = _reference_attention(q, k, v)
    assert out.shape == (B, N_HEADS, S, H_DIM)
    # bf16 MXU operands + approx (EUP) reciprocal => loosened tolerance.
    max_err = float(jnp.max(jnp.abs(out - ref)))
    assert jnp.allclose(out, ref, atol=3e-2, rtol=3e-2), max_err

    print("KERNEL_OK")
</pallas_src>

<mosaic_0001>
module attributes {stable_mosaic.version = 11 : i64} {
  func.func @_flash_attn_kernel(%arg0: i32, %arg1: i32, %arg2: i32, %arg3: memref<1x8x256xbf16, #tpu.memory_space<vmem>>, %arg4: memref<1x8x256xbf16, #tpu.memory_space<vmem>>, %arg5: memref<1x8x256xbf16, #tpu.memory_space<vmem>>, %arg6: memref<1x8x256xf32, #tpu.memory_space<vmem>>, %arg7: memref<8x1xf32, #tpu.memory_space<vmem>>, %arg8: memref<8x1xf32, #tpu.memory_space<vmem>>, %arg9: memref<8x256xf32, #tpu.memory_space<vmem>>) attributes {dimension_semantics = [#tpu.dimension_semantics<parallel>, #tpu.dimension_semantics<parallel>, #tpu.dimension_semantics<arbitrary>], iteration_bounds = array<i64: 6, 2, 2>, scalar_prefetch = 0 : i64, scratch_operands = 3 : i64, tpu.core_type = #tpu.core_type<tc>, window_params = [{transform_indices = @transform_0, window_bounds = array<i64: 1, 8, 256>}, {transform_indices = @transform_1, window_bounds = array<i64: 1, 8, 256>}, {transform_indices = @transform_2, window_bounds = array<i64: 1, 8, 256>}, {transform_indices = @transform_3, window_bounds = array<i64: 1, 8, 256>}]} {
    %c0_i32 = arith.constant 0 : i32
    %0 = arith.cmpi eq, %arg2, %c0_i32 : i32
    %1 = arith.extui %0 : i1 to i32
    %c0_i32_0 = arith.constant 0 : i32
    %2 = arith.cmpi ne, %1, %c0_i32_0 : i32
    scf.if %2 {
      %cst_26 = arith.constant 0xFF800000 : f32
      %38 = vector.broadcast %cst_26 : f32 to vector<8x1xf32>
      %c0_27 = arith.constant 0 : index
      %c0_28 = arith.constant 0 : index
      %39 = vector.load %arg7[%c0_27, %c0_28] : memref<8x1xf32, #tpu.memory_space<vmem>>, vector<8x1xf32>
      tpu.vector_store %arg7[%c0_27, %c0_28], %38 {strides = array<i32>} : memref<8x1xf32, #tpu.memory_space<vmem>>, vector<8x1xf32>,
      %cst_29 = arith.constant 0.000000e+00 : f32
      %40 = vector.broadcast %cst_29 : f32 to vector<8x1xf32>
      %c0_30 = arith.constant 0 : index
      %c0_31 = arith.constant 0 : index
      %41 = vector.load %arg8[%c0_30, %c0_31] : memref<8x1xf32, #tpu.memory_space<vmem>>, vector<8x1xf32>
      tpu.vector_store %arg8[%c0_30, %c0_31], %40 {strides = array<i32>} : memref<8x1xf32, #tpu.memory_space<vmem>>, vector<8x1xf32>,
      %cst_32 = arith.constant 0.000000e+00 : f32
      %42 = vector.broadcast %cst_32 : f32 to vector<8x256xf32>
      %c0_33 = arith.constant 0 : index
      %c0_34 = arith.constant 0 : index
      %43 = vector.load %arg9[%c0_33, %c0_34] : memref<8x256xf32, #tpu.memory_space<vmem>>, vector<8x256xf32>
      tpu.vector_store %arg9[%c0_33, %c0_34], %42 {strides = array<i32>} : memref<8x256xf32, #tpu.memory_space<vmem>>, vector<8x256xf32>,
    } else {
    }
    %c0 = arith.constant 0 : index
    %c0_1 = arith.constant 0 : index
    %c0_2 = arith.constant 0 : index
    %3 = vector.load %arg3[%c0, %c0_1, %c0_2] : memref<1x8x256xbf16, #tpu.memory_space<vmem>>, vector<1x8x256xbf16>
    %4 = vector.shape_cast %3 : vector<1x8x256xbf16> to vector<8x256xbf16>
    %cst = arith.constant 6.250000e-02 : bf16
    %5 = vector.broadcast %cst : bf16 to vector<8x256xbf16>
    %6 = arith.mulf %4, %5 : vector<8x256xbf16>
    %c0_3 = arith.constant 0 : index
    %c0_4 = arith.constant 0 : index
    %c0_5 = arith.constant 0 : index
    %7 = vector.load %arg4[%c0_3, %c0_4, %c0_5] : memref<1x8x256xbf16, #tpu.memory_space<vmem>>, vector<1x8x256xbf16>
    %8 = vector.shape_cast %7 : vector<1x8x256xbf16> to vector<8x256xbf16>
    %c0_6 = arith.constant 0 : index
    %c0_7 = arith.constant 0 : index
    %c0_8 = arith.constant 0 : index
    %9 = vector.load %arg5[%c0_6, %c0_7, %c0_8] : memref<1x8x256xbf16, #tpu.memory_space<vmem>>, vector<1x8x256xbf16>
    %10 = vector.shape_cast %9 : vector<1x8x256xbf16> to vector<8x256xbf16>
    %cst_9 = arith.constant dense<0.000000e+00> : vector<8x8xf32>
    %11 = tpu.matmul %6, %8, %cst_9 {dimension_numbers = #tpu.dot_dimension_numbers<[1], [1], [0], [0], [0, 0, 1, 0], [], []>} : vector<8x256xbf16>, vector<8x256xbf16>, vector<8x8xf32> -> vector<8x8xf32>
    %c0_10 = arith.constant 0 : index
    %c0_11 = arith.constant 0 : index
    %12 = vector.load %arg7[%c0_10, %c0_11] : memref<8x1xf32, #tpu.memory_space<vmem>>, vector<8x1xf32>
    %cst_12 = arith.constant dense<0xFF800000> : vector<8xf32>
    %13 = vector.multi_reduction <maximumf>, %11, %cst_12 [1] : vector<8x8xf32> to vector<8xf32>
    %14 = vector.shape_cast %13 : vector<8xf32> to vector<8x1xf32>
    %15 = arith.maximumf %12, %14 : vector<8x1xf32>
    %16 = arith.subf %12, %15 : vector<8x1xf32>
    %17 = math.exp %16 : vector<8x1xf32>
    %18 = vector.broadcast %15 : vector<8x1xf32> to vector<8x8xf32>
    %19 = arith.subf %11, %18 : vector<8x8xf32>
    %20 = math.exp %19 : vector<8x8xf32>
    %c0_13 = arith.constant 0 : index
    %c0_14 = arith.constant 0 : index
    %21 = vector.load %arg8[%c0_13, %c0_14] : memref<8x1xf32, #tpu.memory_space<vmem>>, vector<8x1xf32>
    %22 = arith.mulf %17, %21 : vector<8x1xf32>
    %cst_15 = arith.constant dense<0.000000e+00> : vector<8xf32>
    %23 = vector.multi_reduction <add>, %20, %cst_15 [1] : vector<8x8xf32> to vector<8xf32>
    %24 = vector.shape_cast %23 : vector<8xf32> to vector<8x1xf32>
    %25 = arith.addf %22, %24 : vector<8x1xf32>
    %c0_16 = arith.constant 0 : index
    %c0_17 = arith.constant 0 : index
    %26 = vector.load %arg8[%c0_16, %c0_17] : memref<8x1xf32, #tpu.memory_space<vmem>>, vector<8x1xf32>
    tpu.vector_store %arg8[%c0_16, %c0_17], %25 {strides = array<i32>} : memref<8x1xf32, #tpu.memory_space<vmem>>, vector<8x1xf32>,
    %c0_18 = arith.constant 0 : index
    %c0_19 = arith.constant 0 : index
    %27 = vector.load %arg9[%c0_18, %c0_19] : memref<8x256xf32, #tpu.memory_space<vmem>>, vector<8x256xf32>
    %28 = vector.broadcast %17 : vector<8x1xf32> to vector<8x256xf32>
    %29 = arith.mulf %28, %27 : vector<8x256xf32>
    %30 = arith.truncf %20 : vector<8x8xf32> to vector<8x8xbf16>
    %cst_20 = arith.constant dense<0.000000e+00> : vector<8x256xf32>
    %31 = tpu.matmul %30, %10, %cst_20 {dimension_numbers = #tpu.dot_dimension_numbers<[1], [0], [0], [1], [0, 0, 1, 1], [], []>} : vector<8x8xbf16>, vector<8x256xbf16>, vector<8x256xf32> -> vector<8x256xf32>
    %32 = arith.addf %29, %31 : vector<8x256xf32>
    %c0_21 = arith.constant 0 : index
    %c0_22 = arith.constant 0 : index
    %33 = vector.load %arg9[%c0_21, %c0_22] : memref<8x256xf32, #tpu.memory_space<vmem>>, vector<8x256xf32>
    tpu.vector_store %arg9[%c0_21, %c0_22], %32 {strides = array<i32>} : memref<8x256xf32, #tpu.memory_space<vmem>>, vector<8x256xf32>,
    %c0_23 = arith.constant 0 : index
    %c0_24 = arith.constant 0 : index
    %34 = vector.load %arg7[%c0_23, %c0_24] : memref<8x1xf32, #tpu.memory_space<vmem>>, vector<8x1xf32>
    tpu.vector_store %arg7[%c0_23, %c0_24], %15 {strides = array<i32>} : memref<8x1xf32, #tpu.memory_space<vmem>>, vector<8x1xf32>,
    %c1_i32 = arith.constant 1 : i32
    %35 = arith.cmpi eq, %arg2, %c1_i32 : i32
    %36 = arith.extui %35 : i1 to i32
    %c0_i32_25 = arith.constant 0 : i32
    %37 = arith.cmpi ne, %36, %c0_i32_25 : i32
    scf.if %37 {
      %c0_26 = arith.constant 0 : index
      %c0_27 = arith.constant 0 : index
      %38 = vector.load %arg8[%c0_26, %c0_27] : memref<8x1xf32, #tpu.memory_space<vmem>>, vector<8x1xf32>
      %39 = tpu.reciprocal %38 {approx = true} : vector<8x1xf32> -> vector<8x1xf32>
      %c0_28 = arith.constant 0 : index
      %c0_29 = arith.constant 0 : index
      %40 = vector.load %arg9[%c0_28, %c0_29] : memref<8x256xf32, #tpu.memory_space<vmem>>, vector<8x256xf32>
      %41 = vector.broadcast %39 : vector<8x1xf32> to vector<8x256xf32>
      %42 = arith.mulf %40, %41 : vector<8x256xf32>
      %c0_30 = arith.constant 0 : index
      %c0_31 = arith.constant 0 : index
      %c0_32 = arith.constant 0 : index
      %43 = vector.load %arg6[%c0_30, %c0_31, %c0_32] : memref<1x8x256xf32, #tpu.memory_space<vmem>>, vector<1x8x256xf32>
      %44 = vector.shape_cast %43 : vector<1x8x256xf32> to vector<8x256xf32>
      %45 = vector.shape_cast %42 : vector<8x256xf32> to vector<1x8x256xf32>
      tpu.vector_store %arg6[%c0_30, %c0_31, %c0_32], %45 {strides = array<i32>} : memref<1x8x256xf32, #tpu.memory_space<vmem>>, vector<1x8x256xf32>,
    } else {
    }
    return
  }
  func.func @transform_0(%arg0: i32, %arg1: i32, %arg2: i32) -> (i32, i32, i32) {
    %c0_i32 = arith.constant 0 : i32
    %c0_i32_0 = arith.constant 0 : i32
    return %arg0, %arg1, %c0_i32 : i32, i32, i32
  }
  func.func @transform_1(%arg0: i32, %arg1: i32, %arg2: i32) -> (i32, i32, i32) {
    %c0_i32 = arith.constant 0 : i32
    %c0_i32_0 = arith.constant 0 : i32
    return %arg0, %arg2, %c0_i32 : i32, i32, i32
  }
  func.func @transform_2(%arg0: i32, %arg1: i32, %arg2: i32) -> (i32, i32, i32) {
    %c0_i32 = arith.constant 0 : i32
    %c0_i32_0 = arith.constant 0 : i32
    return %arg0, %arg2, %c0_i32 : i32, i32, i32
  }
  func.func @transform_3(%arg0: i32, %arg1: i32, %arg2: i32) -> (i32, i32, i32) {
    %c0_i32 = arith.constant 0 : i32
    %c0_i32_0 = arith.constant 0 : i32
    return %arg0, %arg1, %c0_i32 : i32, i32, i32
  }
}

</mosaic_0001>

<llo_original>
// kernel: tpu_custom_call.1
$region0: #{tpu_custom_call.1}
  #allocation0 [shape = 'u32[]', space=smem, size = 0x4, offset = 0x4, fixed_abs, tag = 'smem constant byte address 0x4 - core index']
  #allocation1 [shape = 'u32[144,128]{1,0:T(1,128)}', space=vmem, size = 0x12000, scoped, tag = 'internal scratch']
  #allocation2 [shape = 'f32[8,1]{1,0:T(8,128)}', space=vmem, size = 0x1000, scoped, tag = 'scratch operand']
  #allocation3 [shape = 'f32[8,1]{1,0:T(8,128)}', space=vmem, size = 0x1000, scoped, tag = 'scratch operand']
  #allocation4 [shape = 'f32[8,256]{1,0:T(8,128)}', space=vmem, size = 0x2000, scoped, tag = 'scratch operand']
  %s0 = inlined_call_operand.hbm [shape: bf16[6,16,256], index: 0, kind: input, shape index: {}]
  %s1 = inlined_call_operand.hbm [shape: bf16[6,16,256], index: 1, kind: input, shape index: {}]
  %s2 = inlined_call_operand.hbm [shape: bf16[6,16,256], index: 2, kind: input, shape index: {}]
  %s3 = inlined_call_operand.hbm [shape: f32[6,16,256], index: 3, kind: output, shape index: {}]
  %s4 = sld [smem:[#allocation0]]
  $region65: #{tpu_custom_call.1} parent=0
    _
  %s6 = ssub.s32 1, %s4
  %s7 = scalar_select 0, %s6, %s4
  $region1: #{tpu_custom_call.1} parent=0
    #allocation5 [shape = 'u8[8192]{0}', space=vmem, size = 0x2000, scoped, tag = 'input window, operand 0']
    #allocation6 [shape = 's32[2]{0}', space=sflag, size = 0x8, scoped, tag = 'scoped memory for tpu_custom_call.1']
    #allocation7 [shape = 's32[2]{0}', space=sflag, size = 0x8, scoped, tag = 'scoped memory for tpu_custom_call.1']
    #allocation8 [shape = 'u8[8192]{0}', space=vmem, size = 0x2000, scoped, tag = 'input window, operand 1']
    #allocation9 [shape = 's32[2]{0}', space=sflag, size = 0x8, scoped, tag = 'scoped memory for tpu_custom_call.1']
    #allocation10 [shape = 'u8[8192]{0}', space=vmem, size = 0x2000, scoped, tag = 'input window, operand 2']
    #allocation11 [shape = 'u8[16384]{0}', space=vmem, size = 0x4000, scoped, tag = 'output window, operand 0']
    %8 = vsyncpa [#allocation6], 0
    %s9 = scalar_lea.sflag [#allocation6], 1
    %10 = vsyncpa %s9, 0
    %11 = vsyncpa [#allocation9], 0
    %s12 = scalar_lea.sflag [#allocation9], 1
    %13 = vsyncpa %s12, 0
    %14 = vsyncpa [#allocation7], 0
    %s15 = scalar_lea.sflag [#allocation7], 1
    %16 = vsyncpa %s15, 0
    loop: start=0, step=1, limit=26
    $region2: #{tpu_custom_call.1} parent=1 // loop_pre_header
      _
    $region3: #{tpu_custom_call.1} parent=1 // loop_header
      %s18 = sphi 0, %s22
      %p19 = scmp.ge.s32.totalorder %s18, 26
      %s25 = sphi 0, %s44
      %s26 = sphi 0, %s40
      %s27 = sphi 0, %s36
      %s28 = sphi 0, %s25
      %s29 = sphi 0, %s26
      %s30 = sphi 0, %s27
      %s31 = sphi 0, %s28
      %s32 = sphi 0, %s29
      %s33 = sphi 0, %s30
      %s49 = sphi 0, %s51
      %s52 = sphi 0, %s49
      %s53 = sphi 0, %s52
      %s69 = sphi 0, %s53
      %s77 = sphi 0, %s79
      %s80 = sphi 0, %s77
      %s81 = sphi 0, %s80
      %s97 = sphi 0, %s81
      %s105 = sphi 0, %s107
      %s108 = sphi 0, %s105
      %s109 = sphi 0, %s108
      %s125 = sphi 0, %s109
      %s133 = sphi 0, %s135
      %s136 = sphi 0, %s133
      %s137 = sphi 0, %s136
      %s153 = sphi 0, %s137
    $region4: #{tpu_custom_call.1} parent=1 // loop_header_branch
      %21 = sbr.rel (%p19) target = $region8
    $region5: #{tpu_custom_call.1} parent=1 // loop_body
      %s23 = ssub.s32 %s18, 1
      %s24 = ssub.s32 %s18, 2
      %s34 = sadd.s32 1, %s27
      %p35 = scmp.ge.s32.totalorder %s34, 2
      %s36 = scalar_select %p35, 0, %s34
      %s37 = sadd.s32 1, %s26
      %s38 = scalar_select %p35, %s37, %s26
      %p39 = scmp.ge.s32.totalorder %s38, 2
      %s40 = scalar_select %p39, 0, %s38
      %s41 = sadd.s32 1, %s25
      %s42 = scalar_select %p39, %s41, %s25
      %p43 = scmp.ge.s32.totalorder %s42, 6
      %s44 = scalar_select %p43, 0, %s42
      %s45 = ssub.s32 %s25, %s44
      %s46 = ssub.s32 %s26, %s40
      %s47 = sor.u32 %s45, %s46
      %p48 = scmp.eq.s32.totalorder %s47, 0
      %s50 = sadd.s32 %s49, 1
      %s51 = scalar_select %p48, %s49, %s50
      %p54 = pneg %p48
      %p55 = scmp.eq.s32.totalorder %s18, 23
      %p56 = por %p54, %p55
      %p57 = scmp.ne.s32.totalorder %s49, %s52
      %p58 = scmp.eq.s32.totalorder %s18, 0
      %p59 = por %p57, %p58
      %p60 = scmp.ne.s32.totalorder %s49, %s52
      %p61 = scmp.eq.s32.totalorder %s23, 23
      %p62 = por %p60, %p61
      %p63 = scmp.ne.s32.totalorder %s52, %s53
      %p64 = scmp.eq.s32.totalorder %s23, 0
      %p65 = por %p63, %p64
      %p66 = scmp.ne.s32.totalorder %s52, %s53
      %p67 = scmp.eq.s32.totalorder %s24, 23
      %p68 = por %p66, %p67
      %p70 = scmp.ne.s32.totalorder %s53, %s69
      %p71 = scmp.eq.s32.totalorder %s24, 0
      %p72 = por %p70, %p71
      %s73 = ssub.s32 %s25, %s44
      %s74 = ssub.s32 %s27, %s36
      %s75 = sor.u32 %s73, %s74
      %p76 = scmp.eq.s32.totalorder %s75, 0
      %s78 = sadd.s32 %s77, 1
      %s79 = scalar_select %p76, %s77, %s78
      %p82 = pneg %p76
      %p83 = scmp.eq.s32.totalorder %s18, 23
      %p84 = por %p82, %p83
      %p85 = scmp.ne.s32.totalorder %s77, %s80
      %p86 = scmp.eq.s32.totalorder %s18, 0
      %p87 = por %p85, %p86
      %p88 = scmp.ne.s32.totalorder %s77, %s80
      %p89 = scmp.eq.s32.totalorder %s23, 23
      %p90 = por %p88, %p89
      %p91 = scmp.ne.s32.totalorder %s80, %s81
      %p92 = scmp.eq.s32.totalorder %s23, 0
      %p93 = por %p91, %p92
      %p94 = scmp.ne.s32.totalorder %s80, %s81
      %p95 = scmp.eq.s32.totalorder %s24, 23
      %p96 = por %p94, %p95
      %p98 = scmp.ne.s32.totalorder %s81, %s97
      %p99 = scmp.eq.s32.totalorder %s24, 0
      %p100 = por %p98, %p99
      %s101 = ssub.s32 %s25, %s44
      %s102 = ssub.s32 %s27, %s36
      %s103 = sor.u32 %s101, %s102
      %p104 = scmp.eq.s32.totalorder %s103, 0
      %s106 = sadd.s32 %s105, 1
      %s107 = scalar_select %p104, %s105, %s106
      %p110 = pneg %p104
      %p111 = scmp.eq.s32.totalorder %s18, 23
      %p112 = por %p110, %p111
      %p113 = scmp.ne.s32.totalorder %s105, %s108
      %p114 = scmp.eq.s32.totalorder %s18, 0
      %p115 = por %p113, %p114
      %p116 = scmp.ne.s32.totalorder %s105, %s108
      %p117 = scmp.eq.s32.totalorder %s23, 23
      %p118 = por %p116, %p117
      %p119 = scmp.ne.s32.totalorder %s108, %s109
      %p120 = scmp.eq.s32.totalorder %s23, 0
      %p121 = por %p119, %p120
      %p122 = scmp.ne.s32.totalorder %s108, %s109
      %p123 = scmp.eq.s32.totalorder %s24, 23
      %p124 = por %p122, %p123
      %p126 = scmp.ne.s32.totalorder %s109, %s125
      %p127 = scmp.eq.s32.totalorder %s24, 0
      %p128 = por %p126, %p127
      %s129 = ssub.s32 %s25, %s44
      %s130 = ssub.s32 %s26, %s40
      %s131 = sor.u32 %s129, %s130
      %p132 = scmp.eq.s32.totalorder %s131, 0
      %s134 = sadd.s32 %s133, 1
      %s135 = scalar_select %p132, %s133, %s134
      %p138 = pneg %p132
      %p139 = scmp.eq.s32.totalorder %s18, 23
      %p140 = por %p138, %p139
      %p141 = scmp.ne.s32.totalorder %s133, %s136
      %p142 = scmp.eq.s32.totalorder %s18, 0
      %p143 = por %p141, %p142
      %p144 = scmp.ne.s32.totalorder %s133, %s136
      %p145 = scmp.eq.s32.totalorder %s23, 23
      %p146 = por %p144, %p145
      %p147 = scmp.ne.s32.totalorder %s136, %s137
      %p148 = scmp.eq.s32.totalorder %s23, 0
      %p149 = por %p147, %p148
      %p150 = scmp.ne.s32.totalorder %s136, %s137
      %p151 = scmp.eq.s32.totalorder %s24, 23
      %p152 = por %p150, %p151
      %p154 = scmp.ne.s32.totalorder %s137, %s153
      %p155 = scmp.eq.s32.totalorder %s24, 0
      %p156 = por %p154, %p155
      %p157 = scmp.le.s32.totalorder 1, %s18
      %p158 = scmp.lt.s32.totalorder %s18, 25
      %p159 = pnand %p157, %p158
      %p160 = pneg %p159
      // Predicated region
      $region9: #{tpu_custom_call.1} parent=5 // pred_check
        _
      $region10: #{tpu_custom_call.1} parent=5 // pred_check_branch
        %162 = sbr.rel (%p159) target = $region12
      $region11: #{tpu_custom_call.1} parent=5 // pred_region
        %s163 = ssub.s32 %s18, 1
      $region12: #{tpu_custom_call.1} parent=5 // pred_fallthru
        _
      %p164 = scmp.lt.s32.totalorder %s18, 24
      // Predicated region
      $region13: #{tpu_custom_call.1} parent=5 // pred_check
        %p165 = pneg %p164
      $region14: #{tpu_custom_call.1} parent=5 // pred_check_branch
        %167 = sbr.rel (%p165) target = $region16
      $region15: #{tpu_custom_call.1} parent=5 // pred_region
        // Predicated region
        $region17: #{tpu_custom_call.1} parent=15 // pred_check
          %p168 = pneg %p59
        $region18: #{tpu_custom_call.1} parent=15 // pred_check_branch
          %170 = sbr.rel (%p168) target = $region20
        $region19: #{tpu_custom_call.1} parent=15 // pred_region
          %s171 = sand.u32 %s49, 1
          %s172 = scalar_lea.sflag [#allocation6], %s171
          %s173 = sand.u32 %s49, 1
          %s174 = smul.addr %s173, 8
          %s175 = scalar_lea.vmem [#allocation5], %s174
          %s177 = ssub.s32 128, 128
          %178 = vsyncadd %s172, %s177
          %s179 = smul.addr %s26, 2
          %s180 = smul.addr %s25, 4
          %s181 = sadd.s32 %s179, %s180
          %s182 = smul.addr %s181, 64
          %s183 = scalar_lea.hbm %s0, %s182
          %s185 = sshll.u32 %s175, 4
          %s186 = int_to_ptr.vmem [resolvable:$true] %s185
          %188 = dma.hbm_to_vmem [thread:$0]  %s183, 128, %s186, %s172
        $region20: #{tpu_custom_call.1} parent=15 // pred_fallthru
          _
        // Predicated region
        $region21: #{tpu_custom_call.1} parent=15 // pred_check
          %p189 = pneg %p87
        $region22: #{tpu_custom_call.1} parent=15 // pred_check_branch
          %191 = sbr.rel (%p189) target = $region24
        $region23: #{tpu_custom_call.1} parent=15 // pred_region
          %s192 = sand.u32 %s18, 1
          %s193 = scalar_lea.sflag [#allocation9], %s192
          %s194 = sand.u32 %s77, 1
          %s195 = smul.addr %s194, 8
          %s196 = scalar_lea.vmem [#allocation8], %s195
          %s198 = ssub.s32 128, 128
          %199 = vsyncadd %s193, %s198
          %s200 = smul.addr %s27, 2
          %s201 = smul.addr %s25, 4
          %s202 = sadd.s32 %s200, %s201
          %s203 = smul.addr %s202, 64
          %s204 = scalar_lea.hbm %s1, %s203
          %s206 = sshll.u32 %s196, 4
          %s207 = int_to_ptr.vmem [resolvable:$true] %s206
          %209 = dma.hbm_to_vmem [thread:$0]  %s204, 128, %s207, %s193
        $region24: #{tpu_custom_call.1} parent=15 // pred_fallthru
          _
        // Predicated region
        $region25: #{tpu_custom_call.1} parent=15 // pred_check
          %p210 = pneg %p115
        $region26: #{tpu_custom_call.1} parent=15 // pred_check_branch
          %212 = sbr.rel (%p210) target = $region28
        $region27: #{tpu_custom_call.1} parent=15 // pred_region
          %s213 = sand.u32 %s18, 1
          %s214 = scalar_lea.sflag [#allocation9], %s213
          %s215 = sand.u32 %s105, 1
          %s216 = smul.addr %s215, 8
          %s217 = scalar_lea.vmem [#allocation10], %s216
          %s219 = ssub.s32 128, 128
          %220 = vsyncadd %s214, %s219
          %s221 = smul.addr %s27, 2
          %s222 = smul.addr %s25, 4
          %s223 = sadd.s32 %s221, %s222
          %s224 = smul.addr %s223, 64
          %s225 = scalar_lea.hbm %s2, %s224
          %s227 = sshll.u32 %s217, 4
          %s228 = int_to_ptr.vmem [resolvable:$true] %s227
          %230 = dma.hbm_to_vmem [thread:$0]  %s225, 128, %s228, %s214
        $region28: #{tpu_custom_call.1} parent=15 // pred_fallthru
          _
      $region16: #{tpu_custom_call.1} parent=5 // pred_fallthru
        _
      %p231 = scmp.le.s32.totalorder 1, %s18
      %p232 = scmp.lt.s32.totalorder %s18, 25
      %p233 = pnand %p231, %p232
      %p234 = pneg %p233
      // Predicated region
      $region29: #{tpu_custom_call.1} parent=5 // pred_check
        _
      $region30: #{tpu_custom_call.1} parent=5 // pred_check_branch
        %236 = sbr.rel (%p233) target = $region32
      $region31: #{tpu_custom_call.1} parent=5 // pred_region
        %s237 = ssub.s32 %s18, 1
        %s238 = sand.u32 %s52, 1
        %s239 = scalar_lea.sflag [#allocation6], %s238
        %s240 = sand.u32 %s52, 1
        %s241 = smul.addr %s240, 8
        %s242 = scalar_lea.vmem [#allocation5], %s241
        // Predicated region
        $region33: #{tpu_custom_call.1} parent=31 // pred_check
          %p243 = pneg %p65
        $region34: #{tpu_custom_call.1} parent=31 // pred_check_branch
          %245 = sbr.rel (%p243) target = $region36
        $region35: #{tpu_custom_call.1} parent=31 // pred_region
          %246 = dma.done %s239, 128
        $region36: #{tpu_custom_call.1} parent=31 // pred_fallthru
          _
        %s247 = sand.u32 %s23, 1
        %s248 = scalar_lea.sflag [#allocation9], %s247
        %s249 = sand.u32 %s80, 1
        %s250 = smul.addr %s249, 8
        %s251 = scalar_lea.vmem [#allocation8], %s250
        // Predicated region
        $region37: #{tpu_custom_call.1} parent=31 // pred_check
          %p252 = pneg %p93
        $region38: #{tpu_custom_call.1} parent=31 // pred_check_branch
          %254 = sbr.rel (%p252) target = $region40
        $region39: #{tpu_custom_call.1} parent=31 // pred_region
          %255 = dma.done %s248, 128
        $region40: #{tpu_custom_call.1} parent=31 // pred_fallthru
          _
        %s256 = sand.u32 %s23, 1
        %s257 = scalar_lea.sflag [#allocation9], %s256
        %s258 = sand.u32 %s108, 1
        %s259 = smul.addr %s258, 8
        %s260 = scalar_lea.vmem [#allocation10], %s259
        // Predicated region
        $region41: #{tpu_custom_call.1} parent=31 // pred_check
          %p261 = pneg %p121
        $region42: #{tpu_custom_call.1} parent=31 // pred_check_branch
          %263 = sbr.rel (%p261) target = $region44
        $region43: #{tpu_custom_call.1} parent=31 // pred_region
          %264 = dma.done %s257, 128
        $region44: #{tpu_custom_call.1} parent=31 // pred_fallthru
          _
        %s265 = sand.u32 %s52, 1
        %s266 = scalar_lea.sflag [#allocation6], %s265
        %s267 = sand.u32 %s52, 1
        %s268 = smul.addr %s267, 8
        %s269 = scalar_lea.vmem [#allocation5], %s268
        %p270 = pneg %p65
        %p271 = pneg %p62
        %s272 = sand.u32 %s23, 1
        %s273 = scalar_lea.sflag [#allocation9], %s272
        %s274 = sand.u32 %s80, 1
        %s275 = smul.addr %s274, 8
        %s276 = scalar_lea.vmem [#allocation8], %s275
        %p277 = pneg %p93
        %p278 = pneg %p90
        %s279 = sand.u32 %s23, 1
        %s280 = scalar_lea.sflag [#allocation9], %s279
        %s281 = sand.u32 %s108, 1
        %s282 = smul.addr %s281, 8
        %s283 = scalar_lea.vmem [#allocation10], %s282
        %p284 = pneg %p121
        %p285 = pneg %p118
        %p286 = pneg %p149
        %p287 = pneg %p146
        %s288 = sand.u32 %s136, 1
        %s289 = scalar_lea.sflag [#allocation7], %s288
        %s290 = sand.u32 %s136, 1
        %s291 = smul.addr %s290, 16
        %s292 = scalar_lea.vmem [#allocation11], %s291
        %p295 = scmp.eq.s32.totalorder %s30, 0
        // Predicated region
        $region45: #{tpu_custom_call.1} parent=31 // pred_check
          %p296 = pneg %p295
        $region46: #{tpu_custom_call.1} parent=31 // pred_check_branch
          %298 = sbr.rel (%p296) target = $region48
        $region47: #{tpu_custom_call.1} parent=31 // pred_region
          %vm299 = vcmask 7168
          %300 = vst.msk [vmem:[#allocation2] sm:$0xff] %vm299, -inf
          %301 = vst.msk [vmem:[#allocation3] sm:$0xff] %vm299, 0.0
          %302 = vst [vmem:[#allocation4] sm:$0xff] 0.0
          %303 = vst [vmem:[#allocation4 + $0x8] sm:$0xff] 0.0
        $region48: #{tpu_custom_call.1} parent=31 // pred_fallthru
          _
        %v304 = vld [vmem:[%s242] sm:$0xff]
        %v305 = vmul.bf16 %v304, 1031814528
        %v306 = vld [vmem:[%s251] sm:$0xff]
        %v307 = vld [vmem:[%s260] sm:$0xff]
        %v309 = vunpack.c.l.b16 %v305
        %v310 = vunpack.c.h.b16 %v305
        %v311 = vpack.c.b16 %v309, %v309
        %v312 = vpack.c.b16 %v310, %v310
        %v316 = vunpack.c.l.b16 %v306
        %v317 = vunpack.c.h.b16 %v306
        %v318 = vpack.c.b16 %v316, %v316
        %v319 = vpack.c.b16 %v317, %v317
        %322 = vmatprep.subr.bf16.mxu0 %v319
        %323 = vmatpush1.bf16.xpose.msra.mxu0 %v318
        %324 = vmatprep.subr.bf16.mxu0 0
        %325 = vmatpush1.bf16.xpose.msra.mxu0 0
        %326 = vmatprep.subr.bf16.mxu0 0
        %327 = vmatpush1.bf16.xpose.msra.mxu0 0
        %328 = vmatprep.subr.bf16.mxu0 0
        %329 = vmatpush1.bf16.xpose.msra.mxu0 0
        %330 = vmatprep.subr.bf16.mxu0 0
        %331 = vmatpush1.bf16.xpose.msra.mxu0 0
        %332 = vmatprep.subr.bf16.mxu0 0
        %333 = vmatpush1.bf16.xpose.msra.mxu0 0
        %334 = vmatprep.subr.bf16.mxu0 0
        %335 = vmatpush1.bf16.xpose.msra.mxu0 0
        %336 = vmatprep.subr.bf16.mxu0 0
        %337 = vmatpush1.bf16.xpose.msra.mxu0 0
        %338 = vmatprep.subr.bf16.mxu0 0
        %339 = vmatpush1.bf16.xpose.msra.mxu0 0
        %340 = vmatprep.subr.bf16.mxu0 0
        %341 = vmatpush1.bf16.xpose.msra.mxu0 0
        %342 = vmatprep.subr.bf16.mxu0 0
        %343 = vmatpush1.bf16.xpose.msra.mxu0 0
        %344 = vmatprep.subr.bf16.mxu0 0
        %345 = vmatpush1.bf16.xpose.msra.mxu0 0
        %346 = vmatprep.subr.bf16.mxu0 0
        %347 = vmatpush1.bf16.xpose.msra.mxu0 0
        %348 = vmatprep.subr.bf16.mxu0 0
        %349 = vmatpush1.bf16.xpose.msra.mxu0 0
        %350 = vmatprep.subr.bf16.mxu0 0
        %351 = vmatpush1.bf16.xpose.msra.mxu0 0
        %352 = vmatprep.subr.bf16.mxu0 0
        %353 = vmatpush1.bf16.xpose.msra.mxu0 0
        %354 = vmatprep.mubr.bf16.mxu0 %v312
        %355 = vmatmul.mubr.bf16.gmra.mrb[0].mxu0 %v311
        %v356 = vpop.f32.mrb[0].mxu0
        %v357 = vadd.f32 0.0, %v356
        %v358 = vpop.f32.mrb[0].mxu0
        %v359 = vpop.f32.mrb[0].mxu0
        %v360 = vpop.f32.mrb[0].mxu0
        %361 = vdwg.mxu0
        %v362 = vld [vmem:[#allocation2] sm:$0xff]
        %vm363 = vcmask 64512
        %v364 = vsel %vm363, %v357, -inf
        %365 = vmax.xlane.f32.xlu0 %v364
        %v366 = vpop.xlane.xlu0 %365
        %v367 = vmax.f32 %v362, %v366
        %v368 = vsub.f32 %v362, %v367
        %v369 = vmul.f32 %v368, 1.442695
        %v370 = vpow.pop %v369
        %372 = vset.pattern.permute.xlu0 0
        %373 = vperm.xlu0 %372, %v367
        %v374 = vpop.permute.xlu0 %373
        %v376 = vsub.f32 %v357, %v374
        %v377 = vmul.f32 %v376, 1.442695
        %v378 = vpow.pop %v377
        %v379 = vld [vmem:[#allocation3] sm:$0xff]
        %v380 = vmul.f32 %v370, %v379
        %v381 = vsel %vm363, %v378, 0.0
        %382 = vadd.xlane.f32.xlu0 %v381
        %v383 = vpop.xlane.xlu0 %382
        %v384 = vadd.f32 %v380, %v383
        %vm385 = vcmask 7168
        %386 = vst.msk [vmem:[#allocation3] sm:$0xff] %vm385, %v384
        %v387 = vld [vmem:[#allocation4] sm:$0xff]
        %v388 = vld [vmem:[#allocation4 + $0x8] sm:$0xff]
        %390 = vset.pattern.permute.xlu0 0
        %391 = vperm.xlu0 %390, %v370
        %v392 = vpop.permute.xlu0 %391
        %v394 = vmul.f32 %v392, %v387
        %v395 = vmul.f32 %v392, %v388
        %v396 = vpack.c.bf16 %v378, %v378
        %v398 = vunpack.c.l.b16 %v307
        %v399 = vunpack.c.h.b16 %v307
        %v400 = vpack.c.b16 %v398, %v398
        %v401 = vpack.c.b16 %v399, %v399
        %v403 = vsel %vm363, %v396, 0
        %vm405 = vcmask 1043456
        %v407 = vsel %vm405, %v400, 0
        %v410 = vsel %vm405, %v401, 0
        %412 = vmatprep.subr.bf16.mxu0 %v410
        %413 = vmatpush1.bf16.msra.mxu0 %v407
        %414 = vmatprep.subr.bf16.mxu0 0
        %415 = vmatpush1.bf16.msra.mxu0 0
        %416 = vmatprep.subr.bf16.mxu0 0
        %417 = vmatpush1.bf16.msra.mxu0 0
        %418 = vmatprep.subr.bf16.mxu0 0
        %419 = vmatpush1.bf16.msra.mxu0 0
        %420 = vmatprep.subr.bf16.mxu0 0
        %421 = vmatpush1.bf16.msra.mxu0 0
        %422 = vmatprep.subr.bf16.mxu0 0
        %423 = vmatpush1.bf16.msra.mxu0 0
        %424 = vmatprep.subr.bf16.mxu0 0
        %425 = vmatpush1.bf16.msra.mxu0 0
        %426 = vmatprep.subr.bf16.mxu0 0
        %427 = vmatpush1.bf16.msra.mxu0 0
        %428 = vmatprep.subr.bf16.mxu0 0
        %429 = vmatpush1.bf16.msra.mxu0 0
        %430 = vmatprep.subr.bf16.mxu0 0
        %431 = vmatpush1.bf16.msra.mxu0 0
        %432 = vmatprep.subr.bf16.mxu0 0
        %433 = vmatpush1.bf16.msra.mxu0 0
        %434 = vmatprep.subr.bf16.mxu0 0
        %435 = vmatpush1.bf16.msra.mxu0 0
        %436 = vmatprep.subr.bf16.mxu0 0
        %437 = vmatpush1.bf16.msra.mxu0 0
        %438 = vmatprep.subr.bf16.mxu0 0
        %439 = vmatpush1.bf16.msra.mxu0 0
        %440 = vmatprep.subr.bf16.mxu0 0
        %441 = vmatpush1.bf16.msra.mxu0 0
        %442 = vmatprep.subr.bf16.mxu0 0
        %443 = vmatpush1.bf16.msra.mxu0 0
        %444 = vmatprep.mubr.bf16.mxu0 0
        %445 = vmatmul.mubr.bf16.gmra.mrb[0].mxu0 %v403
        %v446 = vpop.f32.mrb[0].mxu0
        %v447 = vadd.f32 0.0, %v446
        %v448 = vpop.f32.mrb[0].mxu0
        %v449 = vadd.f32 0.0, %v448
        %v450 = vpop.f32.mrb[0].mxu0
        %v451 = vpop.f32.mrb[0].mxu0
        %452 = vdwg.mxu0
        %v453 = vadd.f32 %v394, %v447
        %v454 = vadd.f32 %v395, %v449
        %455 = vst [vmem:[#allocation4] sm:$0xff] %v453
        %456 = vst [vmem:[#allocation4 + $0x8] sm:$0xff] %v454
        %457 = vst.msk [vmem:[#allocation2] sm:$0xff] %vm385, %v367
        %p458 = scmp.eq.s32.totalorder %s30, 1
        // Predicated region
        $region49: #{tpu_custom_call.1} parent=31 // pred_check
          %p459 = pneg %p458
        $region50: #{tpu_custom_call.1} parent=31 // pred_check_branch
          %461 = sbr.rel (%p459) target = $region52
        $region51: #{tpu_custom_call.1} parent=31 // pred_region
          %v462 = vld [vmem:[#allocation3] sm:$0xff]
          %v463 = vrcp.pop %v462
          %v464 = vld [vmem:[#allocation4] sm:$0xff]
          %v465 = vld [vmem:[#allocation4 + $0x8] sm:$0xff]
          %467 = vset.pattern.permute.xlu0 0
          %468 = vperm.xlu0 %467, %v463
          %v469 = vpop.permute.xlu0 %468
          %v471 = vmul.f32 %v464, %v469
          %v472 = vmul.f32 %v465, %v469
          %473 = vst [vmem:[%s292] sm:$0xff] %v471
          %474 = vst [vmem:[%s292 + $0x8] sm:$0xff] %v472
        $region52: #{tpu_custom_call.1} parent=31 // pred_fallthru
          _
        %s475 = sand.u32 %s136, 1
        %s476 = scalar_lea.sflag [#allocation7], %s475
        %s477 = sand.u32 %s136, 1
        %s478 = smul.addr %s477, 16
        %s479 = scalar_lea.vmem [#allocation11], %s478
        // Predicated region
        $region53: #{tpu_custom_call.1} parent=31 // pred_check
          %p480 = pneg %p146
        $region54: #{tpu_custom_call.1} parent=31 // pred_check_branch
          %482 = sbr.rel (%p480) target = $region56
        $region55: #{tpu_custom_call.1} parent=31 // pred_region
          %s484 = ssub.s32 256, 256
          %485 = vsyncadd %s476, %s484
          %s486 = smul.addr %s29, 2
          %s487 = smul.addr %s28, 4
          %s488 = sadd.s32 %s486, %s487
          %s489 = smul.addr %s488, 128
          %s490 = scalar_lea.hbm %s3, %s489
          %s492 = sshll.u32 %s479, 4
          %s493 = int_to_ptr.vmem [resolvable:$true] %s492
          %495 = dma.vmem_to_hbm [thread:$0]  %s493, 256, %s490, %s476
        $region56: #{tpu_custom_call.1} parent=31 // pred_fallthru
          _
      $region32: #{tpu_custom_call.1} parent=5 // pred_fallthru
        _
      %p496 = scmp.le.s32.totalorder 2, %s18
      // Predicated region
      $region57: #{tpu_custom_call.1} parent=5 // pred_check
        %p497 = pneg %p496
      $region58: #{tpu_custom_call.1} parent=5 // pred_check_branch
        %499 = sbr.rel (%p497) target = $region60
      $region59: #{tpu_custom_call.1} parent=5 // pred_region
        %s500 = ssub.s32 %s18, 2
        // Predicated region
        $region61: #{tpu_custom_call.1} parent=59 // pred_check
          %p501 = pneg %p152
        $region62: #{tpu_custom_call.1} parent=59 // pred_check_branch
          %503 = sbr.rel (%p501) target = $region64
        $region63: #{tpu_custom_call.1} parent=59 // pred_region
          %s504 = sand.u32 %s137, 1
          %s505 = scalar_lea.sflag [#allocation7], %s504
          %s506 = sand.u32 %s137, 1
          %s507 = smul.addr %s506, 16
          %s508 = scalar_lea.vmem [#allocation11], %s507
          %509 = dma.done %s505, 256
        $region64: #{tpu_custom_call.1} parent=59 // pred_fallthru
          _
      $region60: #{tpu_custom_call.1} parent=5 // pred_fallthru
        _
    $region6: #{tpu_custom_call.1} parent=1 // loop_footer
      %s22 = sadd.s32 1, %s18
    $region7: #{tpu_custom_call.1} parent=1 // loop_footer_branch
      %17 = sbr.rel target = $region3
    $region8: #{tpu_custom_call.1} parent=1 // loop_exit
      _
    %510 = vsyncpa [#allocation6], 1
    %s511 = scalar_lea.sflag [#allocation6], 1
    %512 = vsyncpa %s511, 1
    %513 = vsyncpa [#allocation9], 1
    %s514 = scalar_lea.sflag [#allocation9], 1
    %515 = vsyncpa %s514, 1
    %516 = vsyncpa [#allocation7], 1
    %s517 = scalar_lea.sflag [#allocation7], 1
    %518 = vsyncpa %s517, 1

</llo_original>
